<compile_context>
chip_gen: v5e
topology: v5e:2x2
jax: 0.10.0
libtpu: 0.0.40
codegen_flags: <defaults>
</compile_context>

<pallas_src>
import functools

import jax
import jax.numpy as jnp
from jax import lax
from jax.experimental import pallas as pl
from jax.experimental.pallas import tpu as pltpu


def conv1d_block_kernel(x_ref, w_ref, p_ref, gg_ref, gt_ref, s_ref, st_ref, m_ref,
                        o_ref, *, kernel_size, pad, fold_taps, inv_n, eps):
    # x_ref:  (C_in, L)   bf16, channel-major, batch packed along lanes (L = Bb*T)
    # w_ref:  (C_out, K*C_in) folded  OR  (K, C_out, C_in) per-tap   (bf16)
    # p_ref:  (2, C_out, 1) f32   [conv bias, GN beta]
    # gg_ref: (C_out, G)  f32  group indicator * gamma (broadcast matrix)
    # gt_ref: (G, C_out)  f32  group indicator^T       (reduce matrix)
    # s_ref:  (L, Bb)     f32  per-batch-segment summing matrix
    # st_ref: (Bb, L)     f32  its transpose (broadcast matrix)
    # m_ref:  (K, 1, L)   bf16 per-tap halo masks
    # o_ref:  (C_out, L)
    xb = x_ref[...]                                   # (C_in, L) bf16

    def tap(k):
        s = pad - k                                   # static small shift
        xk = xb if s == 0 else jnp.roll(xb, s, axis=1)
        if s != 0:
            xk = xk * m_ref[k]                        # zero wrapped / cross-segment lanes
        return xk

    # ---- Conv1d (+bias): bf16 MXU inputs, f32 accumulation ----
    if fold_taps:
        x_cat = jnp.concatenate([tap(k) for k in range(kernel_size)], axis=0)
        acc = jnp.dot(w_ref[...], x_cat, preferred_element_type=jnp.float32)
    else:
        acc = jnp.dot(w_ref[0], tap(0), preferred_element_type=jnp.float32)
        for k in range(1, kernel_size):
            acc = acc + jnp.dot(w_ref[k], tap(k), preferred_element_type=jnp.float32)
    acc = acc + p_ref[0]                              # (C_out, L) f32

    # ---- GroupNorm via low-rank (group x batch-segment) stats ----
    s_mat = s_ref[...]
    gt = gt_ref[...]
    seg_sum = jnp.dot(acc, s_mat, preferred_element_type=jnp.float32)        # (C_out, Bb)
    seg_sq = jnp.dot(acc * acc, s_mat, preferred_element_type=jnp.float32)   # (C_out, Bb)
    mean_s = jnp.dot(gt, seg_sum, preferred_element_type=jnp.float32) * inv_n   # (G, Bb)
    msq_s = jnp.dot(gt, seg_sq, preferred_element_type=jnp.float32) * inv_n
    # TODO(synk): E[x^2]-E[x]^2 (clamped to >=0) loses precision when |mean| >> std;
    # a centered two-pass variance would be safer for production accuracy.
    var_s = jnp.maximum(msq_s - mean_s * mean_s, 0.0)
    inv_s = lax.rsqrt(var_s + eps)                                            # (G, Bb)

    st_mat = st_ref[...]
    gg = gg_ref[...]
    scale = jnp.dot(gg, jnp.dot(inv_s, st_mat, preferred_element_type=jnp.float32),
                    preferred_element_type=jnp.float32)                       # gamma / std
    shift = p_ref[1] - jnp.dot(
        gg, jnp.dot(mean_s * inv_s, st_mat, preferred_element_type=jnp.float32),
        preferred_element_type=jnp.float32)                                   # beta - mean*gamma/std
    y = acc * scale + shift

    # ---- Mish: y * tanh(softplus(y)) == y * u/(u+2),  u = e*(e+2),  e = exp(y) ----
    e = jnp.exp(jnp.minimum(y, 20.0))
    u = e * (e + 2.0)
    o_ref[...] = (y * (u / (u + 2.0))).astype(o_ref.dtype)


def _pick_batch_block(B, T, lane_block):
    """Batch block Bb (divisor of B): lane-dense (Bb*T % 128 == 0), <= lane_block,
    preferring >= 4 (else >= 2) grid steps so the pipeline has steps to overlap
    and v7x dual-TC can split the 'parallel' axis."""
    cands = [d for d in range(1, B + 1)
             if B % d == 0 and (d * T) % 128 == 0 and d * T <= lane_block]
    for min_steps in (4, 2, 1):
        tier = [d for d in cands if B // d >= min_steps]
        if tier:
            return max(tier)
    if T % 128 == 0:
        return 1                      # T alone exceeds lane_block but is lane-dense
    # TODO(synk): no lane-dense divisor -> single full-batch block: grid=(1,),
    # masked stores if B*T % 128 != 0, and no tiling for very large B*T (a
    # T-tiled stats accumulate/finalize pass would be needed there).
    return B


def conv1d_block_channel_major(x2, weight, bias, gamma, beta, *, batch, n_groups=8,
                               eps=1e-5, out_dtype=jnp.float32,
                               conv_dtype=jnp.bfloat16, lane_block=1024,
                               vmem_limit_bytes=48 * 1024 * 1024):
    """Fused Conv1d -> GroupNorm -> Mish on channel-major data.

    x2: (C_in, B*T) with batch packed along the lane axis (column j = b*T + t).
    Returns (C_out, B*T).  Calling this directly (instead of conv1d_block)
    avoids two full HBM transpose passes around a memory-bound op.
    """
    C_in, BT = x2.shape
    B = batch
    assert BT % B == 0
    T = BT // B
    C_out, C_in_w, K = weight.shape
    assert C_in_w == C_in
    assert C_out % n_groups == 0
    if K % 2 == 0:
        # TODO(synk): even kernel_size gives output length T+1 in PyTorch
        # (padding=K//2 is not 'same'); the lane-packed path assumes T_out == T.
        raise NotImplementedError("even kernel_size is not supported")
    pad = K // 2
    g_size = C_out // n_groups

    Bb = _pick_batch_block(B, T, lane_block)
    nb = B // Bb
    L = Bb * T

    x2 = x2.astype(conv_dtype)                        # stream x in bf16

    # Conv weight: single folded matmul for small 16-aligned C_in (aligned sublane
    # concat), K per-tap matmuls otherwise (no (K*C_in, L) temporary).
    fold_taps = (C_in % 16 == 0) and (C_in < 128)
    if fold_taps:
        w_arg = jnp.transpose(weight, (0, 2, 1)).reshape(C_out, K * C_in).astype(conv_dtype)
        w_spec = pl.BlockSpec((C_out, K * C_in), lambda i: (0, 0))
    else:
        w_arg = jnp.transpose(weight, (2, 0, 1)).astype(conv_dtype)           # (K, C_out, C_in)
        w_spec = pl.BlockSpec((K, C_out, C_in), lambda i: (0, 0, 0))

    # [conv bias, GN beta] merged into one small parameter block.
    params = jnp.stack([bias, beta]).reshape(2, C_out, 1).astype(jnp.float32)

    # Low-rank GroupNorm factors (constant across grid steps; tiny).
    grp = jnp.arange(C_out) // g_size
    gt_mat = (jnp.arange(n_groups)[:, None] == grp[None, :]).astype(jnp.float32)  # (G, C_out)
    gg_mat = gt_mat.T * gamma[:, None].astype(jnp.float32)                        # (C_out, G)
    seg = jnp.arange(L) // T
    s_mat = (seg[:, None] == jnp.arange(Bb)[None, :]).astype(jnp.float32)          # (L, Bb)
    st_mat = s_mat.T                                                               # (Bb, L)

    # Per-tap halo masks: zero lanes whose source sample falls outside its segment.
    pos = jnp.arange(L) % T
    masks = []
    for k in range(K):
        s = pad - k
        lo, hi = max(0, s), min(T, T + s)
        masks.append(((pos >= lo) & (pos < hi)).astype(conv_dtype))
    mask = jnp.stack(masks).reshape(K, 1, L)

    kern = functools.partial(conv1d_block_kernel, kernel_size=K, pad=pad,
                             fold_taps=fold_taps, inv_n=1.0 / float(g_size * T),
                             eps=float(eps))

    return pl.pallas_call(
        kern,
        out_shape=jax.ShapeDtypeStruct((C_out, BT), out_dtype),
        grid_spec=pltpu.PrefetchScalarGridSpec(
            num_scalar_prefetch=0,
            grid=(nb,),
            in_specs=[
                pl.BlockSpec((C_in, L), lambda i: (0, i)),
                w_spec,
                pl.BlockSpec((2, C_out, 1), lambda i: (0, 0, 0)),
                pl.BlockSpec((C_out, n_groups), lambda i: (0, 0)),
                pl.BlockSpec((n_groups, C_out), lambda i: (0, 0)),
                pl.BlockSpec((L, Bb), lambda i: (0, 0)),
                pl.BlockSpec((Bb, L), lambda i: (0, 0)),
                pl.BlockSpec((K, 1, L), lambda i: (0, 0, 0)),
            ],
            out_specs=pl.BlockSpec((C_out, L), lambda i: (0, i)),
        ),
        compiler_params=pltpu.CompilerParams(
            dimension_semantics=("parallel",),
            vmem_limit_bytes=vmem_limit_bytes),
    )(x2, w_arg, params, gg_mat, gt_mat, s_mat, st_mat, mask)


def conv1d_block(x, weight, bias, gamma, beta, *, n_groups=8, eps=1e-5,
                 conv_dtype=jnp.bfloat16, **kw):
    """PyTorch Conv1dBlock forward: x (B, C_in, T) -> (B, C_out, T)."""
    B, C_in, T = x.shape
    C_out = weight.shape[0]
    # TODO(synk): each transpose below is an extra HBM pass around a mem-bound
    # kernel; callers with channel-major activations should call
    # conv1d_block_channel_major directly (or fuse via allow_input_fusion).
    x2 = jnp.transpose(x.astype(conv_dtype), (1, 0, 2)).reshape(C_in, B * T)
    out2 = conv1d_block_channel_major(x2, weight, bias, gamma, beta, batch=B,
                                      n_groups=n_groups, eps=eps,
                                      out_dtype=x.dtype, conv_dtype=conv_dtype, **kw)
    return jnp.transpose(out2.reshape(C_out, B, T), (1, 0, 2))


if __name__ == "__main__":
    # Conv1dBlock(inp_channels=4, out_channels=16, kernel_size=3, n_groups=8)
    # on x of shape (B=16, C_in=4, T=16): Bb=8 -> lane width 128, grid=(2,).
    B, C_in, C_out, K, T, n_groups = 16, 4, 16, 3, 16, 8
    eps = 1e-5
    pad = K // 2

    key = jax.random.PRNGKey(0)
    k_x, k_w, k_b, k_g, k_be = jax.random.split(key, 5)
    x = jax.random.normal(k_x, (B, C_in, T), jnp.float32)

    fan_in = C_in * K
    bound = 1.0 / (fan_in ** 0.5)
    weight = jax.random.uniform(k_w, (C_out, C_in, K), jnp.float32, -bound, bound)
    bias = jax.random.uniform(k_b, (C_out,), jnp.float32, -bound, bound)
    gamma = 1.0 + 0.1 * jax.random.normal(k_g, (C_out,), jnp.float32)
    beta = 0.05 * jax.random.normal(k_be, (C_out,), jnp.float32)

    out = conv1d_block(x, weight, bias, gamma, beta, n_groups=n_groups, eps=eps)
    out = jax.block_until_ready(out)
    assert out.shape == (B, C_out, T)

    # Plain-JAX reference (conv uses the same bf16 inputs / f32 accumulation as
    # the kernel's MXU path; GroupNorm and Mish in f32 with exact formulas).
    conv_ref = lax.conv_general_dilated(
        x.astype(jnp.bfloat16), weight.astype(jnp.bfloat16),
        window_strides=(1,), padding=[(pad, pad)],
        dimension_numbers=("NCH", "OIH", "NCH"),
        preferred_element_type=jnp.float32) + bias[None, :, None]
    gs = C_out // n_groups
    rc = conv_ref.reshape(B, n_groups, gs, T)
    mean = rc.mean(axis=(2, 3), keepdims=True)
    var = rc.var(axis=(2, 3), keepdims=True)
    rn = ((rc - mean) / jnp.sqrt(var + eps)).reshape(B, C_out, T)
    rn = rn * gamma[None, :, None] + beta[None, :, None]
    ref = rn * jnp.tanh(jnp.logaddexp(0.0, rn))

    err = float(jnp.max(jnp.abs(out - ref)))
    assert jnp.allclose(out, ref, atol=2e-2, rtol=2e-2), err
    print("KERNEL_OK")
</pallas_src>

<mosaic_0001>
module attributes {stable_mosaic.version = 11 : i64} {
  func.func @conv1d_block_kernel(%arg0: i32, %arg1: memref<4x128xbf16, #tpu.memory_space<vmem>>, %arg2: memref<3x16x4xbf16, #tpu.memory_space<vmem>>, %arg3: memref<2x16x1xf32, #tpu.memory_space<vmem>>, %arg4: memref<16x8xf32, #tpu.memory_space<vmem>>, %arg5: memref<8x16xf32, #tpu.memory_space<vmem>>, %arg6: memref<128x8xf32, #tpu.memory_space<vmem>>, %arg7: memref<8x128xf32, #tpu.memory_space<vmem>>, %arg8: memref<3x1x128xbf16, #tpu.memory_space<vmem>>, %arg9: memref<16x128xf32, #tpu.memory_space<vmem>>) attributes {dimension_semantics = [#tpu.dimension_semantics<parallel>], iteration_bounds = array<i64: 2>, scalar_prefetch = 0 : i64, scratch_operands = 0 : i64, tpu.core_type = #tpu.core_type<tc>, window_params = [{transform_indices = @transform_0, window_bounds = array<i64: 4, 128>}, {pipeline_mode = #tpu.pipeline_mode<synchronous>, transform_indices = @transform_1, window_bounds = array<i64: 3, 16, 4>}, {pipeline_mode = #tpu.pipeline_mode<synchronous>, transform_indices = @transform_2, window_bounds = array<i64: 2, 16, 1>}, {pipeline_mode = #tpu.pipeline_mode<synchronous>, transform_indices = @transform_3, window_bounds = array<i64: 16, 8>}, {pipeline_mode = #tpu.pipeline_mode<synchronous>, transform_indices = @transform_4, window_bounds = array<i64: 8, 16>}, {pipeline_mode = #tpu.pipeline_mode<synchronous>, transform_indices = @transform_5, window_bounds = array<i64: 128, 8>}, {pipeline_mode = #tpu.pipeline_mode<synchronous>, transform_indices = @transform_6, window_bounds = array<i64: 8, 128>}, {pipeline_mode = #tpu.pipeline_mode<synchronous>, transform_indices = @transform_7, window_bounds = array<i64: 3, 1, 128>}, {transform_indices = @transform_8, window_bounds = array<i64: 16, 128>}]} {
    %c0 = arith.constant 0 : index
    %c0_0 = arith.constant 0 : index
    %0 = vector.load %arg1[%c0, %c0_0] : memref<4x128xbf16, #tpu.memory_space<vmem>>, vector<4x128xbf16>
    %c0_1 = arith.constant 0 : index
    %c0_2 = arith.constant 0 : index
    %c0_3 = arith.constant 0 : index
    %1 = vector.load %arg2[%c0_1, %c0_2, %c0_3] : memref<3x16x4xbf16, #tpu.memory_space<vmem>>, vector<1x16x4xbf16>
    %2 = vector.shape_cast %1 : vector<1x16x4xbf16> to vector<16x4xbf16>
    %3 = vector.extract_strided_slice %0 {offsets = [0, 127], sizes = [4, 1], strides = [1, 1]} : vector<4x128xbf16> to vector<4x1xbf16>
    %4 = vector.extract_strided_slice %0 {offsets = [0, 0], sizes = [4, 127], strides = [1, 1]} : vector<4x128xbf16> to vector<4x127xbf16>
    %5 = tpu.concatenate %3, %4 in 1 : vector<4x1xbf16>, vector<4x127xbf16> -> vector<4x128xbf16>
    %c0_4 = arith.constant 0 : index
    %c0_5 = arith.constant 0 : index
    %c0_6 = arith.constant 0 : index
    %6 = vector.load %arg8[%c0_4, %c0_5, %c0_6] : memref<3x1x128xbf16, #tpu.memory_space<vmem>>, vector<1x1x128xbf16>
    %7 = vector.shape_cast %6 : vector<1x1x128xbf16> to vector<1x128xbf16>
    %8 = vector.broadcast %7 : vector<1x128xbf16> to vector<4x128xbf16>
    %9 = arith.mulf %5, %8 : vector<4x128xbf16>
    %cst = arith.constant dense<0.000000e+00> : vector<16x128xf32>
    %10 = tpu.matmul %2, %9, %cst {dimension_numbers = #tpu.dot_dimension_numbers<[1], [0], [0], [1], [0, 0, 1, 1], [], []>} : vector<16x4xbf16>, vector<4x128xbf16>, vector<16x128xf32> -> vector<16x128xf32>
    %c1 = arith.constant 1 : index
    %c0_7 = arith.constant 0 : index
    %c0_8 = arith.constant 0 : index
    %11 = vector.load %arg2[%c1, %c0_7, %c0_8] : memref<3x16x4xbf16, #tpu.memory_space<vmem>>, vector<1x16x4xbf16>
    %12 = vector.shape_cast %11 : vector<1x16x4xbf16> to vector<16x4xbf16>
    %cst_9 = arith.constant dense<0.000000e+00> : vector<16x128xf32>
    %13 = tpu.matmul %12, %0, %cst_9 {dimension_numbers = #tpu.dot_dimension_numbers<[1], [0], [0], [1], [0, 0, 1, 1], [], []>} : vector<16x4xbf16>, vector<4x128xbf16>, vector<16x128xf32> -> vector<16x128xf32>
    %14 = arith.addf %10, %13 : vector<16x128xf32>
    %c2 = arith.constant 2 : index
    %c0_10 = arith.constant 0 : index
    %c0_11 = arith.constant 0 : index
    %15 = vector.load %arg2[%c2, %c0_10, %c0_11] : memref<3x16x4xbf16, #tpu.memory_space<vmem>>, vector<1x16x4xbf16>
    %16 = vector.shape_cast %15 : vector<1x16x4xbf16> to vector<16x4xbf16>
    %17 = vector.extract_strided_slice %0 {offsets = [0, 1], sizes = [4, 127], strides = [1, 1]} : vector<4x128xbf16> to vector<4x127xbf16>
    %18 = vector.extract_strided_slice %0 {offsets = [0, 0], sizes = [4, 1], strides = [1, 1]} : vector<4x128xbf16> to vector<4x1xbf16>
    %19 = tpu.concatenate %17, %18 in 1 : vector<4x127xbf16>, vector<4x1xbf16> -> vector<4x128xbf16>
    %c2_12 = arith.constant 2 : index
    %c0_13 = arith.constant 0 : index
    %c0_14 = arith.constant 0 : index
    %20 = vector.load %arg8[%c2_12, %c0_13, %c0_14] : memref<3x1x128xbf16, #tpu.memory_space<vmem>>, vector<1x1x128xbf16>
    %21 = vector.shape_cast %20 : vector<1x1x128xbf16> to vector<1x128xbf16>
    %22 = vector.broadcast %21 : vector<1x128xbf16> to vector<4x128xbf16>
    %23 = arith.mulf %19, %22 : vector<4x128xbf16>
    %cst_15 = arith.constant dense<0.000000e+00> : vector<16x128xf32>
    %24 = tpu.matmul %16, %23, %cst_15 {dimension_numbers = #tpu.dot_dimension_numbers<[1], [0], [0], [1], [0, 0, 1, 1], [], []>} : vector<16x4xbf16>, vector<4x128xbf16>, vector<16x128xf32> -> vector<16x128xf32>
    %25 = arith.addf %14, %24 : vector<16x128xf32>
    %c0_16 = arith.constant 0 : index
    %c0_17 = arith.constant 0 : index
    %c0_18 = arith.constant 0 : index
    %26 = vector.load %arg3[%c0_16, %c0_17, %c0_18] : memref<2x16x1xf32, #tpu.memory_space<vmem>>, vector<1x16x1xf32>
    %27 = vector.shape_cast %26 : vector<1x16x1xf32> to vector<16x1xf32>
    %28 = vector.broadcast %27 : vector<16x1xf32> to vector<16x128xf32>
    %29 = arith.addf %25, %28 : vector<16x128xf32>
    %c0_19 = arith.constant 0 : index
    %c0_20 = arith.constant 0 : index
    %30 = vector.load %arg6[%c0_19, %c0_20] : memref<128x8xf32, #tpu.memory_space<vmem>>, vector<128x8xf32>
    %c0_21 = arith.constant 0 : index
    %c0_22 = arith.constant 0 : index
    %31 = vector.load %arg5[%c0_21, %c0_22] : memref<8x16xf32, #tpu.memory_space<vmem>>, vector<8x16xf32>
    %cst_23 = arith.constant dense<0.000000e+00> : vector<16x8xf32>
    %32 = tpu.matmul %29, %30, %cst_23 {dimension_numbers = #tpu.dot_dimension_numbers<[1], [0], [0], [1], [0, 0, 1, 1], [], []>} : vector<16x128xf32>, vector<128x8xf32>, vector<16x8xf32> -> vector<16x8xf32>
    %33 = arith.mulf %29, %29 : vector<16x128xf32>
    %cst_24 = arith.constant dense<0.000000e+00> : vector<16x8xf32>
    %34 = tpu.matmul %33, %30, %cst_24 {dimension_numbers = #tpu.dot_dimension_numbers<[1], [0], [0], [1], [0, 0, 1, 1], [], []>} : vector<16x128xf32>, vector<128x8xf32>, vector<16x8xf32> -> vector<16x8xf32>
    %cst_25 = arith.constant dense<0.000000e+00> : vector<8x8xf32>
    %35 = tpu.matmul %31, %32, %cst_25 {dimension_numbers = #tpu.dot_dimension_numbers<[1], [0], [0], [1], [0, 0, 1, 1], [], []>} : vector<8x16xf32>, vector<16x8xf32>, vector<8x8xf32> -> vector<8x8xf32>
    %cst_26 = arith.constant 3.125000e-02 : f32
    %36 = vector.broadcast %cst_26 : f32 to vector<8x8xf32>
    %37 = arith.mulf %35, %36 : vector<8x8xf32>
    %cst_27 = arith.constant dense<0.000000e+00> : vector<8x8xf32>
    %38 = tpu.matmul %31, %34, %cst_27 {dimension_numbers = #tpu.dot_dimension_numbers<[1], [0], [0], [1], [0, 0, 1, 1], [], []>} : vector<8x16xf32>, vector<16x8xf32>, vector<8x8xf32> -> vector<8x8xf32>
    %cst_28 = arith.constant 3.125000e-02 : f32
    %39 = vector.broadcast %cst_28 : f32 to vector<8x8xf32>
    %40 = arith.mulf %38, %39 : vector<8x8xf32>
    %41 = arith.mulf %37, %37 : vector<8x8xf32>
    %42 = arith.subf %40, %41 : vector<8x8xf32>
    %cst_29 = arith.constant 0.000000e+00 : f32
    %43 = vector.broadcast %cst_29 : f32 to vector<8x8xf32>
    %44 = arith.maximumf %42, %43 : vector<8x8xf32>
    %cst_30 = arith.constant 9.99999974E-6 : f32
    %45 = vector.broadcast %cst_30 : f32 to vector<8x8xf32>
    %46 = arith.addf %44, %45 : vector<8x8xf32>
    %47 = math.rsqrt %46 : vector<8x8xf32>
    %c0_31 = arith.constant 0 : index
    %c0_32 = arith.constant 0 : index
    %48 = vector.load %arg7[%c0_31, %c0_32] : memref<8x128xf32, #tpu.memory_space<vmem>>, vector<8x128xf32>
    %c0_33 = arith.constant 0 : index
    %c0_34 = arith.constant 0 : index
    %49 = vector.load %arg4[%c0_33, %c0_34] : memref<16x8xf32, #tpu.memory_space<vmem>>, vector<16x8xf32>
    %cst_35 = arith.constant dense<0.000000e+00> : vector<8x128xf32>
    %50 = tpu.matmul %47, %48, %cst_35 {dimension_numbers = #tpu.dot_dimension_numbers<[1], [0], [0], [1], [0, 0, 1, 1], [], []>} : vector<8x8xf32>, vector<8x128xf32>, vector<8x128xf32> -> vector<8x128xf32>
    %cst_36 = arith.constant dense<0.000000e+00> : vector<16x128xf32>
    %51 = tpu.matmul %49, %50, %cst_36 {dimension_numbers = #tpu.dot_dimension_numbers<[1], [0], [0], [1], [0, 0, 1, 1], [], []>} : vector<16x8xf32>, vector<8x128xf32>, vector<16x128xf32> -> vector<16x128xf32>
    %c1_37 = arith.constant 1 : index
    %c0_38 = arith.constant 0 : index
    %c0_39 = arith.constant 0 : index
    %52 = vector.load %arg3[%c1_37, %c0_38, %c0_39] : memref<2x16x1xf32, #tpu.memory_space<vmem>>, vector<1x16x1xf32>
    %53 = vector.shape_cast %52 : vector<1x16x1xf32> to vector<16x1xf32>
    %54 = arith.mulf %37, %47 : vector<8x8xf32>
    %cst_40 = arith.constant dense<0.000000e+00> : vector<8x128xf32>
    %55 = tpu.matmul %54, %48, %cst_40 {dimension_numbers = #tpu.dot_dimension_numbers<[1], [0], [0], [1], [0, 0, 1, 1], [], []>} : vector<8x8xf32>, vector<8x128xf32>, vector<8x128xf32> -> vector<8x128xf32>
    %cst_41 = arith.constant dense<0.000000e+00> : vector<16x128xf32>
    %56 = tpu.matmul %49, %55, %cst_41 {dimension_numbers = #tpu.dot_dimension_numbers<[1], [0], [0], [1], [0, 0, 1, 1], [], []>} : vector<16x8xf32>, vector<8x128xf32>, vector<16x128xf32> -> vector<16x128xf32>
    %57 = vector.broadcast %53 : vector<16x1xf32> to vector<16x128xf32>
    %58 = arith.subf %57, %56 : vector<16x128xf32>
    %59 = arith.mulf %29, %51 : vector<16x128xf32>
    %60 = arith.addf %59, %58 : vector<16x128xf32>
    %cst_42 = arith.constant 2.000000e+01 : f32
    %61 = vector.broadcast %cst_42 : f32 to vector<16x128xf32>
    %62 = arith.minimumf %60, %61 : vector<16x128xf32>
    %63 = math.exp %62 : vector<16x128xf32>
    %cst_43 = arith.constant 2.000000e+00 : f32
    %64 = vector.broadcast %cst_43 : f32 to vector<16x128xf32>
    %65 = arith.addf %63, %64 : vector<16x128xf32>
    %66 = arith.mulf %63, %65 : vector<16x128xf32>
    %cst_44 = arith.constant 2.000000e+00 : f32
    %67 = vector.broadcast %cst_44 : f32 to vector<16x128xf32>
    %68 = arith.addf %66, %67 : vector<16x128xf32>
    %69 = arith.divf %66, %68 : vector<16x128xf32>
    %70 = arith.mulf %60, %69 : vector<16x128xf32>
    %c0_45 = arith.constant 0 : index
    %c0_46 = arith.constant 0 : index
    %71 = vector.load %arg9[%c0_45, %c0_46] : memref<16x128xf32, #tpu.memory_space<vmem>>, vector<16x128xf32>
    tpu.vector_store %arg9[%c0_45, %c0_46], %70 {strides = array<i32>} : memref<16x128xf32, #tpu.memory_space<vmem>>, vector<16x128xf32>,
    return
  }
  func.func @transform_0(%arg0: i32) -> (i32, i32) {
    %c0_i32 = arith.constant 0 : i32
    %c0_i32_0 = arith.constant 0 : i32
    return %c0_i32, %arg0 : i32, i32
  }
  func.func @transform_1(%arg0: i32) -> (i32, i32, i32) {
    %c0_i32 = arith.constant 0 : i32
    %c0_i32_0 = arith.constant 0 : i32
    %c0_i32_1 = arith.constant 0 : i32
    %c0_i32_2 = arith.constant 0 : i32
    return %c0_i32, %c0_i32_0, %c0_i32_1 : i32, i32, i32
  }
  func.func @transform_2(%arg0: i32) -> (i32, i32, i32) {
    %c0_i32 = arith.constant 0 : i32
    %c0_i32_0 = arith.constant 0 : i32
    %c0_i32_1 = arith.constant 0 : i32
    %c0_i32_2 = arith.constant 0 : i32
    return %c0_i32, %c0_i32_0, %c0_i32_1 : i32, i32, i32
  }
  func.func @transform_3(%arg0: i32) -> (i32, i32) {
    %c0_i32 = arith.constant 0 : i32
    %c0_i32_0 = arith.constant 0 : i32
    %c0_i32_1 = arith.constant 0 : i32
    return %c0_i32, %c0_i32_0 : i32, i32
  }
  func.func @transform_4(%arg0: i32) -> (i32, i32) {
    %c0_i32 = arith.constant 0 : i32
    %c0_i32_0 = arith.constant 0 : i32
    %c0_i32_1 = arith.constant 0 : i32
    return %c0_i32, %c0_i32_0 : i32, i32
  }
  func.func @transform_5(%arg0: i32) -> (i32, i32) {
    %c0_i32 = arith.constant 0 : i32
    %c0_i32_0 = arith.constant 0 : i32
    %c0_i32_1 = arith.constant 0 : i32
    return %c0_i32, %c0_i32_0 : i32, i32
  }
  func.func @transform_6(%arg0: i32) -> (i32, i32) {
    %c0_i32 = arith.constant 0 : i32
    %c0_i32_0 = arith.constant 0 : i32
    %c0_i32_1 = arith.constant 0 : i32
    return %c0_i32, %c0_i32_0 : i32, i32
  }
  func.func @transform_7(%arg0: i32) -> (i32, i32, i32) {
    %c0_i32 = arith.constant 0 : i32
    %c0_i32_0 = arith.constant 0 : i32
    %c0_i32_1 = arith.constant 0 : i32
    %c0_i32_2 = arith.constant 0 : i32
    return %c0_i32, %c0_i32_0, %c0_i32_1 : i32, i32, i32
  }
  func.func @transform_8(%arg0: i32) -> (i32, i32) {
    %c0_i32 = arith.constant 0 : i32
    %c0_i32_0 = arith.constant 0 : i32
    return %c0_i32, %arg0 : i32, i32
  }
}

</mosaic_0001>

<llo_original>
// kernel: tpu_custom_call.1
$region0: #{tpu_custom_call.1}
  #allocation0 [shape = 'u32[]', space=smem, size = 0x4, offset = 0x4, fixed_abs, tag = 'smem constant byte address 0x4 - core index']
  #allocation1 [shape = 'u32[72,128]{1,0:T(1,128)}', space=vmem, size = 0x9000, scoped, tag = 'internal scratch']
  %s0 = inlined_call_operand.vmem [shape: bf16[4,256], index: 0, kind: input, shape index: {}]
  %s1 = inlined_call_operand.vmem [shape: bf16[3,16,4], index: 1, kind: input, shape index: {}]
  %s2 = inlined_call_operand.vmem [shape: f32[2,16,1], index: 2, kind: input, shape index: {}]
  %s3 = inlined_call_operand.vmem [shape: f32[16,8], index: 3, kind: input, shape index: {}]
  %s4 = inlined_call_operand.vmem [shape: f32[8,16], index: 4, kind: input, shape index: {}]
  %s5 = inlined_call_operand.vmem [shape: f32[128,8], index: 5, kind: input, shape index: {}]
  %s6 = inlined_call_operand.vmem [shape: f32[8,128], index: 6, kind: input, shape index: {}]
  %s7 = inlined_call_operand.vmem [shape: bf16[3,1,128], index: 7, kind: input, shape index: {}]
  %s8 = inlined_call_operand.hbm [shape: f32[16,256], index: 8, kind: output, shape index: {}]
  %s9 = sld [smem:[#allocation0]]
  $region65: #{tpu_custom_call.1} parent=0
    _
  %s11 = ssub.s32 1, %s9
  %s12 = scalar_select 0, %s11, %s9
  $region1: #{tpu_custom_call.1} parent=0
    #allocation2 [shape = 'u8[16384]{0}', space=vmem, size = 0x4000, scoped, tag = 'output window, operand 0']
    #allocation3 [shape = 's32[2]{0}', space=sflag, size = 0x8, scoped, tag = 'scoped memory for tpu_custom_call.1']
    %13 = vsyncpa [#allocation3], 0
    %s14 = scalar_lea.sflag [#allocation3], 1
    %15 = vsyncpa %s14, 0
    loop: start=0, step=1, limit=4
    $region2: #{tpu_custom_call.1} parent=1 // loop_pre_header
      _
    $region3: #{tpu_custom_call.1} parent=1 // loop_header
      %s17 = sphi 0, %s21
      %p18 = scmp.ge.s32.totalorder %s17, 4
      %s27 = sphi 0, %s29
      %s30 = sphi 0, %s27
      %s31 = sphi 0, %s30
      %s47 = sphi 0, %s31
      %s51 = sphi 0, %s51
      %s53 = sphi 0, %s51
      %s54 = sphi 0, %s53
      %s68 = sphi 0, %s54
      %s72 = sphi 0, %s72
      %s74 = sphi 0, %s72
      %s75 = sphi 0, %s74
      %s89 = sphi 0, %s75
      %s93 = sphi 0, %s93
      %s95 = sphi 0, %s93
      %s96 = sphi 0, %s95
      %s110 = sphi 0, %s96
      %s114 = sphi 0, %s114
      %s116 = sphi 0, %s114
      %s117 = sphi 0, %s116
      %s131 = sphi 0, %s117
      %s135 = sphi 0, %s135
      %s137 = sphi 0, %s135
      %s138 = sphi 0, %s137
      %s152 = sphi 0, %s138
      %s156 = sphi 0, %s156
      %s158 = sphi 0, %s156
      %s159 = sphi 0, %s158
      %s173 = sphi 0, %s159
      %s177 = sphi 0, %s177
      %s179 = sphi 0, %s177
      %s180 = sphi 0, %s179
      %s194 = sphi 0, %s180
      %s200 = sphi 0, %s202
      %s203 = sphi 0, %s200
      %s204 = sphi 0, %s203
      %s220 = sphi 0, %s204
    $region4: #{tpu_custom_call.1} parent=1 // loop_header_branch
      %20 = sbr.rel (%p18) target = $region8
    $region5: #{tpu_custom_call.1} parent=1 // loop_body
      %s22 = ssub.s32 %s17, 1
      %s23 = ssub.s32 %s17, 2
      %s24 = sadd.s32 %s17, 1
      %s25 = ssub.s32 %s17, %s24
      %p26 = scmp.eq.s32.totalorder %s25, 0
      %s28 = sadd.s32 %s27, 1
      %s29 = scalar_select %p26, %s27, %s28
      %p32 = pneg %p26
      %p33 = scmp.eq.s32.totalorder %s17, 1
      %p34 = por %p32, %p33
      %p35 = scmp.ne.s32.totalorder %s27, %s30
      %p36 = scmp.eq.s32.totalorder %s17, 0
      %p37 = por %p35, %p36
      %p38 = scmp.ne.s32.totalorder %s27, %s30
      %p39 = scmp.eq.s32.totalorder %s22, 1
      %p40 = por %p38, %p39
      %p41 = scmp.ne.s32.totalorder %s30, %s31
      %p42 = scmp.eq.s32.totalorder %s22, 0
      %p43 = por %p41, %p42
      %p44 = scmp.ne.s32.totalorder %s30, %s31
      %p45 = scmp.eq.s32.totalorder %s23, 1
      %p46 = por %p44, %p45
      %p48 = scmp.ne.s32.totalorder %s31, %s47
      %p49 = scmp.eq.s32.totalorder %s23, 0
      %p50 = por %p48, %p49
      %s52 = sadd.s32 %s51, 1
      %p55 = scmp.eq.s32.totalorder %s17, 1
      %p56 = scmp.ne.s32.totalorder %s51, %s53
      %p57 = scmp.eq.s32.totalorder %s17, 0
      %p58 = por %p56, %p57
      %p59 = scmp.ne.s32.totalorder %s51, %s53
      %p60 = scmp.eq.s32.totalorder %s22, 1
      %p61 = por %p59, %p60
      %p62 = scmp.ne.s32.totalorder %s53, %s54
      %p63 = scmp.eq.s32.totalorder %s22, 0
      %p64 = por %p62, %p63
      %p65 = scmp.ne.s32.totalorder %s53, %s54
      %p66 = scmp.eq.s32.totalorder %s23, 1
      %p67 = por %p65, %p66
      %p69 = scmp.ne.s32.totalorder %s54, %s68
      %p70 = scmp.eq.s32.totalorder %s23, 0
      %p71 = por %p69, %p70
      %s73 = sadd.s32 %s72, 1
      %p76 = scmp.eq.s32.totalorder %s17, 1
      %p77 = scmp.ne.s32.totalorder %s72, %s74
      %p78 = scmp.eq.s32.totalorder %s17, 0
      %p79 = por %p77, %p78
      %p80 = scmp.ne.s32.totalorder %s72, %s74
      %p81 = scmp.eq.s32.totalorder %s22, 1
      %p82 = por %p80, %p81
      %p83 = scmp.ne.s32.totalorder %s74, %s75
      %p84 = scmp.eq.s32.totalorder %s22, 0
      %p85 = por %p83, %p84
      %p86 = scmp.ne.s32.totalorder %s74, %s75
      %p87 = scmp.eq.s32.totalorder %s23, 1
      %p88 = por %p86, %p87
      %p90 = scmp.ne.s32.totalorder %s75, %s89
      %p91 = scmp.eq.s32.totalorder %s23, 0
      %p92 = por %p90, %p91
      %s94 = sadd.s32 %s93, 1
      %p97 = scmp.eq.s32.totalorder %s17, 1
      %p98 = scmp.ne.s32.totalorder %s93, %s95
      %p99 = scmp.eq.s32.totalorder %s17, 0
      %p100 = por %p98, %p99
      %p101 = scmp.ne.s32.totalorder %s93, %s95
      %p102 = scmp.eq.s32.totalorder %s22, 1
      %p103 = por %p101, %p102
      %p104 = scmp.ne.s32.totalorder %s95, %s96
      %p105 = scmp.eq.s32.totalorder %s22, 0
      %p106 = por %p104, %p105
      %p107 = scmp.ne.s32.totalorder %s95, %s96
      %p108 = scmp.eq.s32.totalorder %s23, 1
      %p109 = por %p107, %p108
      %p111 = scmp.ne.s32.totalorder %s96, %s110
      %p112 = scmp.eq.s32.totalorder %s23, 0
      %p113 = por %p111, %p112
      %s115 = sadd.s32 %s114, 1
      %p118 = scmp.eq.s32.totalorder %s17, 1
      %p119 = scmp.ne.s32.totalorder %s114, %s116
      %p120 = scmp.eq.s32.totalorder %s17, 0
      %p121 = por %p119, %p120
      %p122 = scmp.ne.s32.totalorder %s114, %s116
      %p123 = scmp.eq.s32.totalorder %s22, 1
      %p124 = por %p122, %p123
      %p125 = scmp.ne.s32.totalorder %s116, %s117
      %p126 = scmp.eq.s32.totalorder %s22, 0
      %p127 = por %p125, %p126
      %p128 = scmp.ne.s32.totalorder %s116, %s117
      %p129 = scmp.eq.s32.totalorder %s23, 1
      %p130 = por %p128, %p129
      %p132 = scmp.ne.s32.totalorder %s117, %s131
      %p133 = scmp.eq.s32.totalorder %s23, 0
      %p134 = por %p132, %p133
      %s136 = sadd.s32 %s135, 1
      %p139 = scmp.eq.s32.totalorder %s17, 1
      %p140 = scmp.ne.s32.totalorder %s135, %s137
      %p141 = scmp.eq.s32.totalorder %s17, 0
      %p142 = por %p140, %p141
      %p143 = scmp.ne.s32.totalorder %s135, %s137
      %p144 = scmp.eq.s32.totalorder %s22, 1
      %p145 = por %p143, %p144
      %p146 = scmp.ne.s32.totalorder %s137, %s138
      %p147 = scmp.eq.s32.totalorder %s22, 0
      %p148 = por %p146, %p147
      %p149 = scmp.ne.s32.totalorder %s137, %s138
      %p150 = scmp.eq.s32.totalorder %s23, 1
      %p151 = por %p149, %p150
      %p153 = scmp.ne.s32.totalorder %s138, %s152
      %p154 = scmp.eq.s32.totalorder %s23, 0
      %p155 = por %p153, %p154
      %s157 = sadd.s32 %s156, 1
      %p160 = scmp.eq.s32.totalorder %s17, 1
      %p161 = scmp.ne.s32.totalorder %s156, %s158
      %p162 = scmp.eq.s32.totalorder %s17, 0
      %p163 = por %p161, %p162
      %p164 = scmp.ne.s32.totalorder %s156, %s158
      %p165 = scmp.eq.s32.totalorder %s22, 1
      %p166 = por %p164, %p165
      %p167 = scmp.ne.s32.totalorder %s158, %s159
      %p168 = scmp.eq.s32.totalorder %s22, 0
      %p169 = por %p167, %p168
      %p170 = scmp.ne.s32.totalorder %s158, %s159
      %p171 = scmp.eq.s32.totalorder %s23, 1
      %p172 = por %p170, %p171
      %p174 = scmp.ne.s32.totalorder %s159, %s173
      %p175 = scmp.eq.s32.totalorder %s23, 0
      %p176 = por %p174, %p175
      %s178 = sadd.s32 %s177, 1
      %p181 = scmp.eq.s32.totalorder %s17, 1
      %p182 = scmp.ne.s32.totalorder %s177, %s179
      %p183 = scmp.eq.s32.totalorder %s17, 0
      %p184 = por %p182, %p183
      %p185 = scmp.ne.s32.totalorder %s177, %s179
      %p186 = scmp.eq.s32.totalorder %s22, 1
      %p187 = por %p185, %p186
      %p188 = scmp.ne.s32.totalorder %s179, %s180
      %p189 = scmp.eq.s32.totalorder %s22, 0
      %p190 = por %p188, %p189
      %p191 = scmp.ne.s32.totalorder %s179, %s180
      %p192 = scmp.eq.s32.totalorder %s23, 1
      %p193 = por %p191, %p192
      %p195 = scmp.ne.s32.totalorder %s180, %s194
      %p196 = scmp.eq.s32.totalorder %s23, 0
      %p197 = por %p195, %p196
      %s198 = ssub.s32 %s17, %s24
      %p199 = scmp.eq.s32.totalorder %s198, 0
      %s201 = sadd.s32 %s200, 1
      %s202 = scalar_select %p199, %s200, %s201
      %p205 = pneg %p199
      %p206 = scmp.eq.s32.totalorder %s17, 1
      %p207 = por %p205, %p206
      %p208 = scmp.ne.s32.totalorder %s200, %s203
      %p209 = scmp.eq.s32.totalorder %s17, 0
      %p210 = por %p208, %p209
      %p211 = scmp.ne.s32.totalorder %s200, %s203
      %p212 = scmp.eq.s32.totalorder %s22, 1
      %p213 = por %p211, %p212
      %p214 = scmp.ne.s32.totalorder %s203, %s204
      %p215 = scmp.eq.s32.totalorder %s22, 0
      %p216 = por %p214, %p215
      %p217 = scmp.ne.s32.totalorder %s203, %s204
      %p218 = scmp.eq.s32.totalorder %s23, 1
      %p219 = por %p217, %p218
      %p221 = scmp.ne.s32.totalorder %s204, %s220
      %p222 = scmp.eq.s32.totalorder %s23, 0
      %p223 = por %p221, %p222
      %p224 = scmp.le.s32.totalorder 1, %s17
      %p225 = scmp.lt.s32.totalorder %s17, 3
      %p226 = pnand %p224, %p225
      %p227 = pneg %p226
      // Predicated region
      $region9: #{tpu_custom_call.1} parent=5 // pred_check
        _
      $region10: #{tpu_custom_call.1} parent=5 // pred_check_branch
        %229 = sbr.rel (%p226) target = $region12
      $region11: #{tpu_custom_call.1} parent=5 // pred_region
        %s230 = ssub.s32 %s17, 1
        // Predicated region
        $region13: #{tpu_custom_call.1} parent=11 // pred_check
          %p231 = pneg %p64
        $region14: #{tpu_custom_call.1} parent=11 // pred_check_branch
          %233 = sbr.rel (%p231) target = $region16
        $region15: #{tpu_custom_call.1} parent=11 // pred_region
          _
        $region16: #{tpu_custom_call.1} parent=11 // pred_fallthru
          _
        // Predicated region
        $region17: #{tpu_custom_call.1} parent=11 // pred_check
          %p234 = pneg %p85
        $region18: #{tpu_custom_call.1} parent=11 // pred_check_branch
          %236 = sbr.rel (%p234) target = $region20
        $region19: #{tpu_custom_call.1} parent=11 // pred_region
          _
        $region20: #{tpu_custom_call.1} parent=11 // pred_fallthru
          _
        // Predicated region
        $region21: #{tpu_custom_call.1} parent=11 // pred_check
          %p237 = pneg %p106
        $region22: #{tpu_custom_call.1} parent=11 // pred_check_branch
          %239 = sbr.rel (%p237) target = $region24
        $region23: #{tpu_custom_call.1} parent=11 // pred_region
          _
        $region24: #{tpu_custom_call.1} parent=11 // pred_fallthru
          _
        // Predicated region
        $region25: #{tpu_custom_call.1} parent=11 // pred_check
          %p240 = pneg %p127
        $region26: #{tpu_custom_call.1} parent=11 // pred_check_branch
          %242 = sbr.rel (%p240) target = $region28
        $region27: #{tpu_custom_call.1} parent=11 // pred_region
          _
        $region28: #{tpu_custom_call.1} parent=11 // pred_fallthru
          _
        // Predicated region
        $region29: #{tpu_custom_call.1} parent=11 // pred_check
          %p243 = pneg %p148
        $region30: #{tpu_custom_call.1} parent=11 // pred_check_branch
          %245 = sbr.rel (%p243) target = $region32
        $region31: #{tpu_custom_call.1} parent=11 // pred_region
          _
        $region32: #{tpu_custom_call.1} parent=11 // pred_fallthru
          _
        // Predicated region
        $region33: #{tpu_custom_call.1} parent=11 // pred_check
          %p246 = pneg %p169
        $region34: #{tpu_custom_call.1} parent=11 // pred_check_branch
          %248 = sbr.rel (%p246) target = $region36
        $region35: #{tpu_custom_call.1} parent=11 // pred_region
          _
        $region36: #{tpu_custom_call.1} parent=11 // pred_fallthru
          _
        // Predicated region
        $region37: #{tpu_custom_call.1} parent=11 // pred_check
          %p249 = pneg %p190
        $region38: #{tpu_custom_call.1} parent=11 // pred_check_branch
          %251 = sbr.rel (%p249) target = $region40
        $region39: #{tpu_custom_call.1} parent=11 // pred_region
          _
        $region40: #{tpu_custom_call.1} parent=11 // pred_fallthru
          _
      $region12: #{tpu_custom_call.1} parent=5 // pred_fallthru
        _
      %p252 = scmp.lt.s32.totalorder %s17, 2
      // Predicated region
      $region41: #{tpu_custom_call.1} parent=5 // pred_check
        %p253 = pneg %p252
      $region42: #{tpu_custom_call.1} parent=5 // pred_check_branch
        %255 = sbr.rel (%p253) target = $region44
      $region43: #{tpu_custom_call.1} parent=5 // pred_region
        // Predicated region
        $region45: #{tpu_custom_call.1} parent=43 // pred_check
          %p256 = pneg %p37
        $region46: #{tpu_custom_call.1} parent=43 // pred_check_branch
          %258 = sbr.rel (%p256) target = $region48
        $region47: #{tpu_custom_call.1} parent=43 // pred_region
          %p259 = scmp.lt.s32.totalorder %s17, 1
          %s260 = scalar_select %p259, %s17, 1
          %s261 = smul.addr %s260, 2
          %s262 = scalar_lea.vmem %s0, %s261
        $region48: #{tpu_custom_call.1} parent=43 // pred_fallthru
          _
      $region44: #{tpu_custom_call.1} parent=5 // pred_fallthru
        _
      %p263 = scmp.le.s32.totalorder 1, %s17
      %p264 = scmp.lt.s32.totalorder %s17, 3
      %p265 = pnand %p263, %p264
      %p266 = pneg %p265
      // Predicated region
      $region49: #{tpu_custom_call.1} parent=5 // pred_check
        _
      $region50: #{tpu_custom_call.1} parent=5 // pred_check_branch
        %268 = sbr.rel (%p265) target = $region52
      $region51: #{tpu_custom_call.1} parent=5 // pred_region
        %s269 = ssub.s32 %s17, 1
        %p270 = scmp.lt.s32.totalorder %s22, 1
        %s271 = scalar_select %p270, %s22, 1
        %s272 = smul.addr %s271, 2
        %s273 = scalar_lea.vmem %s0, %s272
        %p274 = pneg %p43
        %p275 = pneg %p40
        %p276 = pneg %p64
        %p277 = pneg %p61
        %p278 = pneg %p85
        %p279 = pneg %p82
        %p280 = pneg %p106
        %p281 = pneg %p103
        %p282 = pneg %p127
        %p283 = pneg %p124
        %p284 = pneg %p148
        %p285 = pneg %p145
        %p286 = pneg %p169
        %p287 = pneg %p166
        %p288 = pneg %p190
        %p289 = pneg %p187
        %p290 = pneg %p216
        %p291 = pneg %p213
        %s292 = sand.u32 %s203, 1
        %s293 = scalar_lea.sflag [#allocation3], %s292
        %s294 = sand.u32 %s203, 1
        %s295 = smul.addr %s294, 16
        %s296 = scalar_lea.vmem [#allocation2], %s295
        %p297 = scmp.lt.s32.totalorder %s22, 1
        %s298 = scalar_select %p297, %s22, 1
        %s299 = smul.addr %s298, 2
        %s300 = scalar_lea.vmem %s0, %s299
        %v302 = vld [vmem:[%s300] sm:$0x3]
        %v303 = vld [vmem:[%s1] sm:$0xf]
        %v304 = vld [vmem:[%s1 + $0x4] sm:$0xf]
        %306 = vst [vmem:[#allocation1] ss:$4 sm:$0xff] %v302
        %v307 = vld.sshfl [vmem:[#allocation1] sm:$0xff pattern:$0x73625140]
        %309 = vrot.lane.b32.xlu0 %v307, 1
        %v310 = vpop.permute.xlu0 %309
        %311 = vst [vmem:[#allocation1] ss:$4 sm:$0xff] %v302
        %v312 = vld.sshfl [vmem:[#allocation1] sm:$0xff pattern:$0x73625140]
        %314 = vrot.lane.b32.xlu0 %v312, 1
        %v315 = vpop.permute.xlu0 %314
        %vm316 = vcmask 7168
        %v319 = vsel %vm316, %v310, %v315
        %v321 = vld [vmem:[%s7] sm:$0x1]
        %v323 = vpack.i.b16 %v321, %v321
        %v325 = vperm.slane %v323, 0
        %v326 = vunpack.c.l.bf16 %v319
        %v327 = vunpack.c.l.bf16 %v325
        %v328 = vmul.f32 %v326, %v327
        %v329 = vpack.c.bf16 %v328, %v328
        %s330 = scalar_lea.vmem %s1, 8
        %v331 = vld [vmem:[%s330] sm:$0xf]
        %v332 = vld [vmem:[%s330 + $0x4] sm:$0xf]
        %v335 = vunpack.c.l.b16 %v331
        %v336 = vunpack.c.l.b16 %v332
        %v337 = vpack.c.b16 %v336, %v335
        %vm338 = vcmask 31744
        %v340 = vsel %vm338, %v337, 0
        %vm342 = vcmask 1041408
        %v343 = vsel %vm342, %v302, 0
        %345 = vmatpush.bf16.msra.mxu0 0
        %346 = vmatpush.bf16.msra.mxu0 0
        %347 = vmatpush.bf16.msra.mxu0 0
        %348 = vmatpush.bf16.msra.mxu0 0
        %349 = vmatpush.bf16.msra.mxu0 0
        %350 = vmatpush.bf16.msra.mxu0 0
        %351 = vmatpush.bf16.msra.mxu0 0
        %352 = vmatpush.bf16.msra.mxu0 %v343
        %353 = vmatmul.bf16.gmra.mxu0 %v340
        %v354 = vpop.f32.mrf.mxu0
        %v355 = vadd.f32 0.0, %v354
        %v356 = vpop.f32.mrf.mxu0
        %v357 = vadd.f32 0.0, %v356
        %358 = vdwg.mxu0
        %v361 = vunpack.c.l.b16 %v303
        %v362 = vunpack.c.l.b16 %v304
        %v363 = vpack.c.b16 %v362, %v361
        %v365 = vsel %vm338, %v363, 0
        %v368 = vsel %vm342, %v329, 0
        %370 = vmatpush.bf16.msra.mxu0 0
        %371 = vmatpush.bf16.msra.mxu0 0
        %372 = vmatpush.bf16.msra.mxu0 0
        %373 = vmatpush.bf16.msra.mxu0 0
        %374 = vmatpush.bf16.msra.mxu0 0
        %375 = vmatpush.bf16.msra.mxu0 0
        %376 = vmatpush.bf16.msra.mxu0 0
        %377 = vmatpush.bf16.msra.mxu0 %v368
        %378 = vmatmul.bf16.gmra.mxu0 %v365
        %v379 = vpop.f32.mrf.mxu0
        %v380 = vadd.f32 %v355, %v379
        %v381 = vpop.f32.mrf.mxu0
        %v382 = vadd.f32 %v357, %v381
        %383 = vdwg.mxu0
        %s384 = scalar_lea.vmem %s1, 16
        %v385 = vld [vmem:[%s384] sm:$0xf]
        %v386 = vld [vmem:[%s384 + $0x4] sm:$0xf]
        %387 = vst [vmem:[#allocation1] ss:$4 sm:$0xff] %v302
        %v388 = vld.sshfl [vmem:[#allocation1] sm:$0xff pattern:$0x73625140]
        %390 = vrot.lane.b32.xlu0 %v388, 127
        %v391 = vpop.permute.xlu0 %390
        %392 = vst [vmem:[#allocation1] ss:$4 sm:$0xff] %v302
        %v393 = vld.sshfl [vmem:[#allocation1] sm:$0xff pattern:$0x73625140]
        %395 = vrot.lane.b32.xlu0 %v393, 127
        %v396 = vpop.permute.xlu0 %395
        %vm397 = vcmask 1039360
        %v400 = vsel %vm397, %v391, %v396
        %s402 = scalar_lea.vmem %s7, 2
        %v403 = vld [vmem:[%s402] sm:$0x1]
        %v405 = vpack.i.b16 %v403, %v403
        %v407 = vperm.slane %v405, 0
        %v408 = vunpack.c.l.bf16 %v400
        %v409 = vunpack.c.l.bf16 %v407
        %v410 = vmul.f32 %v408, %v409
        %v411 = vpack.c.bf16 %v410, %v410
        %v414 = vunpack.c.l.b16 %v385
        %v415 = vunpack.c.l.b16 %v386
        %v416 = vpack.c.b16 %v415, %v414
        %v418 = vsel %vm338, %v416, 0
        %v421 = vsel %vm342, %v411, 0
        %423 = vmatpush.bf16.msra.mxu0 0
        %424 = vmatpush.bf16.msra.mxu0 0
        %425 = vmatpush.bf16.msra.mxu0 0
        %426 = vmatpush.bf16.msra.mxu0 0
        %427 = vmatpush.bf16.msra.mxu0 0
        %428 = vmatpush.bf16.msra.mxu0 0
        %429 = vmatpush.bf16.msra.mxu0 0
        %430 = vmatpush.bf16.msra.mxu0 %v421
        %431 = vmatmul.bf16.gmra.mxu0 %v418
        %v432 = vpop.f32.mrf.mxu0
        %v433 = vadd.f32 0.0, %v432
        %v434 = vpop.f32.mrf.mxu0
        %v435 = vadd.f32 0.0, %v434
        %436 = vdwg.mxu0
        %v437 = vadd.f32 %v380, %v433
        %v438 = vadd.f32 %v382, %v435
        %v439 = vld [vmem:[%s2] sm:$0xff]
        %v440 = vld [vmem:[%s2 + $0x8] sm:$0xff]
        %442 = vset.pattern.permute.xlu0 0
        %443 = vperm.xlu0 %442, %v439
        %v444 = vpop.permute.xlu0 %443
        %447 = vset.pattern.permute.xlu0 0
        %448 = vperm.xlu0 %447, %v440
        %v449 = vpop.permute.xlu0 %448
        %v451 = vadd.f32 %v437, %v444
        %v452 = vadd.f32 %v438, %v449
        %v453 = vld [vmem:[%s5] sm:$0xff]
        %v454 = vld [vmem:[%s5 + $0x8] sm:$0xff]
        %v455 = vld [vmem:[%s5 + $0x10] sm:$0xff]
        %v456 = vld [vmem:[%s5 + $0x18] sm:$0xff]
        %v457 = vld [vmem:[%s5 + $0x20] sm:$0xff]
        %v458 = vld [vmem:[%s5 + $0x28] sm:$0xff]
        %v459 = vld [vmem:[%s5 + $0x30] sm:$0xff]
        %v460 = vld [vmem:[%s5 + $0x38] sm:$0xff]
        %v461 = vld [vmem:[%s5 + $0x40] sm:$0xff]
        %v462 = vld [vmem:[%s5 + $0x48] sm:$0xff]
        %v463 = vld [vmem:[%s5 + $0x50] sm:$0xff]
        %v464 = vld [vmem:[%s5 + $0x58] sm:$0xff]
        %v465 = vld [vmem:[%s5 + $0x60] sm:$0xff]
        %v466 = vld [vmem:[%s5 + $0x68] sm:$0xff]
        %v467 = vld [vmem:[%s5 + $0x70] sm:$0xff]
        %v468 = vld [vmem:[%s5 + $0x78] sm:$0xff]
        %v469 = vld [vmem:[%s4] sm:$0xff]
        %470 = vmatpush.msra.mxu0 %v468
        %471 = vmatpush.msra.mxu0 %v467
        %472 = vmatpush.msra.mxu0 %v466
        %473 = vmatpush.msra.mxu0 %v465
        %474 = vmatpush.msra.mxu0 %v464
        %475 = vmatpush.msra.mxu0 %v463
        %476 = vmatpush.msra.mxu0 %v462
        %477 = vmatpush.msra.mxu0 %v461
        %478 = vmatpush.msra.mxu0 %v460
        %479 = vmatpush.msra.mxu0 %v459
        %480 = vmatpush.msra.mxu0 %v458
        %481 = vmatpush.msra.mxu0 %v457
        %482 = vmatpush.msra.mxu0 %v456
        %483 = vmatpush.msra.mxu0 %v455
        %484 = vmatpush.msra.mxu0 %v454
        %485 = vmatpush.msra.mxu0 %v453
        %486 = vmatmul.f32.gmra.mxu0 %v451
        %v487 = vpop.f32.mrf.mxu0
        %v488 = vadd.f32 0.0, %v487
        %489 = vmatmul.f32.gmra.mxu0 %v452
        %v490 = vpop.f32.mrf.mxu0
        %v491 = vadd.f32 0.0, %v490
        %492 = vdwg.mxu0
        %v493 = vmul.f32 %v451, %v451
        %v494 = vmul.f32 %v452, %v452
        %495 = vmatpush.msra.mxu0 %v468
        %496 = vmatpush.msra.mxu0 %v467
        %497 = vmatpush.msra.mxu0 %v466
        %498 = vmatpush.msra.mxu0 %v465
        %499 = vmatpush.msra.mxu0 %v464
        %500 = vmatpush.msra.mxu0 %v463
        %501 = vmatpush.msra.mxu0 %v462
        %502 = vmatpush.msra.mxu0 %v461
        %503 = vmatpush.msra.mxu0 %v460
        %504 = vmatpush.msra.mxu0 %v459
        %505 = vmatpush.msra.mxu0 %v458
        %506 = vmatpush.msra.mxu0 %v457
        %507 = vmatpush.msra.mxu0 %v456
        %508 = vmatpush.msra.mxu0 %v455
        %509 = vmatpush.msra.mxu0 %v454
        %510 = vmatpush.msra.mxu0 %v453
        %511 = vmatmul.f32.gmra.mxu0 %v493
        %v512 = vpop.f32.mrf.mxu0
        %v513 = vadd.f32 0.0, %v512
        %514 = vmatmul.f32.gmra.mxu0 %v494
        %v515 = vpop.f32.mrf.mxu0
        %v516 = vadd.f32 0.0, %v515
        %517 = vdwg.mxu0
        %vm518 = vcmask 130048
        %v520 = vsel %vm518, %v469, 0
        %522 = vmatpush.msra.mxu0 0.0
        %523 = vmatpush.msra.mxu0 0.0
        %524 = vmatpush.msra.mxu0 0.0
        %525 = vmatpush.msra.mxu0 0.0
        %526 = vmatpush.msra.mxu0 0.0
        %527 = vmatpush.msra.mxu0 0.0
        %528 = vmatpush.msra.mxu0 0.0
        %529 = vmatpush.msra.mxu0 0.0
        %530 = vmatpush.msra.mxu0 0.0
        %531 = vmatpush.msra.mxu0 0.0
        %532 = vmatpush.msra.mxu0 0.0
        %533 = vmatpush.msra.mxu0 0.0
        %534 = vmatpush.msra.mxu0 0.0
        %535 = vmatpush.msra.mxu0 0.0
        %536 = vmatpush.msra.mxu0 %v491
        %537 = vmatpush.msra.mxu0 %v488
        %538 = vmatmul.f32.gmra.mxu0 %v520
        %v539 = vpop.f32.mrf.mxu0
        %v540 = vadd.f32 0.0, %v539
        %541 = vdwg.mxu0
        %v542 = vmul.f32 %v540, 0.03125
        %543 = vmatpush.msra.mxu0 0.0
        %544 = vmatpush.msra.mxu0 0.0
        %545 = vmatpush.msra.mxu0 0.0
        %546 = vmatpush.msra.mxu0 0.0
        %547 = vmatpush.msra.mxu0 0.0
        %548 = vmatpush.msra.mxu0 0.0
        %549 = vmatpush.msra.mxu0 0.0
        %550 = vmatpush.msra.mxu0 0.0
        %551 = vmatpush.msra.mxu0 0.0
        %552 = vmatpush.msra.mxu0 0.0
        %553 = vmatpush.msra.mxu0 0.0
        %554 = vmatpush.msra.mxu0 0.0
        %555 = vmatpush.msra.mxu0 0.0
        %556 = vmatpush.msra.mxu0 0.0
        %557 = vmatpush.msra.mxu0 %v516
        %558 = vmatpush.msra.mxu0 %v513
        %559 = vmatmul.f32.gmra.mxu0 %v520
        %v560 = vpop.f32.mrf.mxu0
        %v561 = vadd.f32 0.0, %v560
        %562 = vdwg.mxu0
        %v563 = vmul.f32 %v561, 0.03125
        %v564 = vmul.f32 %v542, %v542
        %v565 = vsub.f32 %v563, %v564
        %v566 = vmax.f32 %v565, 0.0
        %v567 = vadd.f32 %v566, 1e-05
        %v568 = vrsqrt.pop %v567
        %v569 = vmul.f32 %v568, %v567
        %v570 = vmul.f32 %v569, %v568
        %v571 = vmul.f32 0.5, %v570
        %v572 = vsub.f32 1.5, %v571
        %v573 = vmul.f32 %v568, %v572
        %vm574 = vweird.f32 %v567
        %vm575 = vweird.f32 %v568
        %vm576 = vmor %vm574, %vm575
        %v577 = vsel %vm576, %v568, %v573
        %v578 = vld [vmem:[%s6] sm:$0xff]
        %v579 = vld [vmem:[%s3] sm:$0xff]
        %v580 = vld [vmem:[%s3 + $0x8] sm:$0xff]
        %vm581 = vcmask 64512
        %v583 = vsel %vm581, %v577, 0
        %585 = vmatpush.msra.mxu0 0.0
        %586 = vmatpush.msra.mxu0 0.0
        %587 = vmatpush.msra.mxu0 0.0
        %588 = vmatpush.msra.mxu0 0.0
        %589 = vmatpush.msra.mxu0 0.0
        %590 = vmatpush.msra.mxu0 0.0
        %591 = vmatpush.msra.mxu0 0.0
        %592 = vmatpush.msra.mxu0 0.0
        %593 = vmatpush.msra.mxu0 0.0
        %594 = vmatpush.msra.mxu0 0.0
        %595 = vmatpush.msra.mxu0 0.0
        %596 = vmatpush.msra.mxu0 0.0
        %597 = vmatpush.msra.mxu0 0.0
        %598 = vmatpush.msra.mxu0 0.0
        %599 = vmatpush.msra.mxu0 0.0
        %600 = vmatpush.msra.mxu0 %v578
        %601 = vmatmul.f32.gmra.mxu0 %v583
        %v602 = vpop.f32.mrf.mxu0
        %v603 = vadd.f32 0.0, %v602
        %604 = vdwg.mxu0
        %v606 = vsel %vm581, %v579, 0
        %v609 = vsel %vm581, %v580, 0
        %611 = vmatpush.msra.mxu0 0.0
        %612 = vmatpush.msra.mxu0 0.0
        %613 = vmatpush.msra.mxu0 0.0
        %614 = vmatpush.msra.mxu0 0.0
        %615 = vmatpush.msra.mxu0 0.0
        %616 = vmatpush.msra.mxu0 0.0
        %617 = vmatpush.msra.mxu0 0.0
        %618 = vmatpush.msra.mxu0 0.0
        %619 = vmatpush.msra.mxu0 0.0
        %620 = vmatpush.msra.mxu0 0.0
        %621 = vmatpush.msra.mxu0 0.0
        %622 = vmatpush.msra.mxu0 0.0
        %623 = vmatpush.msra.mxu0 0.0
        %624 = vmatpush.msra.mxu0 0.0
        %625 = vmatpush.msra.mxu0 0.0
        %626 = vmatpush.msra.mxu0 %v603
        %627 = vmatmul.f32.gmra.mxu0 %v606
        %v628 = vpop.f32.mrf.mxu0
        %v629 = vadd.f32 0.0, %v628
        %630 = vmatmul.f32.gmra.mxu0 %v609
        %v631 = vpop.f32.mrf.mxu0
        %v632 = vadd.f32 0.0, %v631
        %633 = vdwg.mxu0
        %s634 = scalar_lea.vmem %s2, 16
        %v635 = vld [vmem:[%s634] sm:$0xff]
        %v636 = vld [vmem:[%s634 + $0x8] sm:$0xff]
        %v637 = vmul.f32 %v542, %v577
        %v639 = vsel %vm581, %v637, 0
        %641 = vmatpush.msra.mxu0 0.0
        %642 = vmatpush.msra.mxu0 0.0
        %643 = vmatpush.msra.mxu0 0.0
        %644 = vmatpush.msra.mxu0 0.0
        %645 = vmatpush.msra.mxu0 0.0
        %646 = vmatpush.msra.mxu0 0.0
        %647 = vmatpush.msra.mxu0 0.0
        %648 = vmatpush.msra.mxu0 0.0
        %649 = vmatpush.msra.mxu0 0.0
        %650 = vmatpush.msra.mxu0 0.0
        %651 = vmatpush.msra.mxu0 0.0
        %652 = vmatpush.msra.mxu0 0.0
        %653 = vmatpush.msra.mxu0 0.0
        %654 = vmatpush.msra.mxu0 0.0
        %655 = vmatpush.msra.mxu0 0.0
        %656 = vmatpush.msra.mxu0 %v578
        %657 = vmatmul.f32.gmra.mxu0 %v639
        %v658 = vpop.f32.mrf.mxu0
        %v659 = vadd.f32 0.0, %v658
        %660 = vdwg.mxu0
        %661 = vmatpush.msra.mxu0 0.0
        %662 = vmatpush.msra.mxu0 0.0
        %663 = vmatpush.msra.mxu0 0.0
        %664 = vmatpush.msra.mxu0 0.0
        %665 = vmatpush.msra.mxu0 0.0
        %666 = vmatpush.msra.mxu0 0.0
        %667 = vmatpush.msra.mxu0 0.0
        %668 = vmatpush.msra.mxu0 0.0
        %669 = vmatpush.msra.mxu0 0.0
        %670 = vmatpush.msra.mxu0 0.0
        %671 = vmatpush.msra.mxu0 0.0
        %672 = vmatpush.msra.mxu0 0.0
        %673 = vmatpush.msra.mxu0 0.0
        %674 = vmatpush.msra.mxu0 0.0
        %675 = vmatpush.msra.mxu0 0.0
        %676 = vmatpush.msra.mxu0 %v659
        %677 = vmatmul.f32.gmra.mxu0 %v606
        %v678 = vpop.f32.mrf.mxu0
        %v679 = vadd.f32 0.0, %v678
        %680 = vmatmul.f32.gmra.mxu0 %v609
        %v681 = vpop.f32.mrf.mxu0
        %v682 = vadd.f32 0.0, %v681
        %683 = vdwg.mxu0
        %685 = vset.pattern.permute.xlu0 0
        %686 = vperm.xlu0 %685, %v635
        %v687 = vpop.permute.xlu0 %686
        %690 = vset.pattern.permute.xlu0 0
        %691 = vperm.xlu0 %690, %v636
        %v692 = vpop.permute.xlu0 %691
        %v694 = vsub.f32 %v687, %v679
        %v695 = vsub.f32 %v692, %v682
        %v696 = vmul.f32 %v451, %v629
        %v697 = vmul.f32 %v452, %v632
        %v698 = vadd.f32 %v696, %v694
        %v699 = vadd.f32 %v697, %v695
        %v700 = vmin.f32 %v698, 20.0
        %v701 = vmin.f32 %v699, 20.0
        %v702 = vmul.f32 %v700, 1.442695
        %v703 = vpow.pop %v702
        %v704 = vmul.f32 %v701, 1.442695
        %v705 = vpow.pop %v704
        %v706 = vadd.f32 %v703, 2.0
        %v707 = vadd.f32 %v705, 2.0
        %v708 = vmul.f32 %v703, %v706
        %v709 = vmul.f32 %v705, %v707
        %v710 = vadd.f32 %v708, 2.0
        %v711 = vadd.f32 %v709, 2.0
        %v712 = vrcp.pop %v710
        %v713 = vmul.f32 %v710, %v712
        %v714 = vsub.f32 1.0, %v713
        %v715 = vmul.f32 %v712, %v714
        %v716 = vadd.f32 %v712, %v715
        %vm717 = vweird.f32 %v710
        %vm718 = vweird.f32 %v712
        %vm719 = vmor %vm717, %vm718
        %v720 = vsel %vm719, %v712, %v716
        %v721 = vand.u32 2147483647, %v710
        %vm722 = vcmp.eq.f32.partialorder %v721, 8.507059e+37
        %v723 = vand.u32 %v710, 2147483648
        %v724 = vor.u32 1.1754944e-38, %v723
        %v725 = vsel %vm722, %v724, %v720
        %v726 = vmul.f32 %v708, %v725
        %v727 = vrcp.pop %v711
        %v728 = vmul.f32 %v711, %v727
        %v729 = vsub.f32 1.0, %v728
        %v730 = vmul.f32 %v727, %v729
        %v731 = vadd.f32 %v727, %v730
        %vm732 = vweird.f32 %v711
        %vm733 = vweird.f32 %v727
        %vm734 = vmor %vm732, %vm733
        %v735 = vsel %vm734, %v727, %v731
        %v736 = vand.u32 2147483647, %v711
        %vm737 = vcmp.eq.f32.partialorder %v736, 8.507059e+37
        %v738 = vand.u32 %v711, 2147483648
        %v739 = vor.u32 1.1754944e-38, %v738
        %v740 = vsel %vm737, %v739, %v735
        %v741 = vmul.f32 %v709, %v740
        %v742 = vmul.f32 %v698, %v726
        %v743 = vmul.f32 %v699, %v741
        %744 = vst [vmem:[%s296] sm:$0xff] %v742
        %745 = vst [vmem:[%s296 + $0x8] sm:$0xff] %v743
        %s746 = sand.u32 %s203, 1
        %s747 = scalar_lea.sflag [#allocation3], %s746
        %s748 = sand.u32 %s203, 1
        %s749 = smul.addr %s748, 16
        %s750 = scalar_lea.vmem [#allocation2], %s749
        // Predicated region
        $region53: #{tpu_custom_call.1} parent=51 // pred_check
          %p751 = pneg %p213
        $region54: #{tpu_custom_call.1} parent=51 // pred_check_branch
          %753 = sbr.rel (%p751) target = $region56
        $region55: #{tpu_custom_call.1} parent=51 // pred_region
          %755 = vsyncadd %s747, 0
          %s756 = smul.addr %s22, 8
          %s757 = scalar_lea.hbm %s8, %s756
          %s758 = sshll.u32 %s750, 4
          %s759 = int_to_ptr.vmem [resolvable:$true] %s758
          %s760 = sshll.u32 %s757, 4
          %s761 = int_to_ptr.hbm [resolvable:$true] %s760
          %766 = dma.vmem_to_hbm [thread:$0]  %s759, 256, %s761, %s747, 128, 256, 8
        $region56: #{tpu_custom_call.1} parent=51 // pred_fallthru
          _
      $region52: #{tpu_custom_call.1} parent=5 // pred_fallthru
        _
      %p767 = scmp.le.s32.totalorder 2, %s17
      // Predicated region
      $region57: #{tpu_custom_call.1} parent=5 // pred_check
        %p768 = pneg %p767
      $region58: #{tpu_custom_call.1} parent=5 // pred_check_branch
        %770 = sbr.rel (%p768) target = $region60
      $region59: #{tpu_custom_call.1} parent=5 // pred_region
        %s771 = ssub.s32 %s17, 2
        // Predicated region
        $region61: #{tpu_custom_call.1} parent=59 // pred_check
          %p772 = pneg %p219
        $region62: #{tpu_custom_call.1} parent=59 // pred_check_branch
          %774 = sbr.rel (%p772) target = $region64
        $region63: #{tpu_custom_call.1} parent=59 // pred_region
          %s775 = sand.u32 %s204, 1
          %s776 = scalar_lea.sflag [#allocation3], %s775
          %s777 = sand.u32 %s204, 1
          %s778 = smul.addr %s777, 16
          %s779 = scalar_lea.vmem [#allocation2], %s778
          %781 = dma.done %s776, 256
        $region64: #{tpu_custom_call.1} parent=59 // pred_fallthru
          _
      $region60: #{tpu_custom_call.1} parent=5 // pred_fallthru
        _
    $region6: #{tpu_custom_call.1} parent=1 // loop_footer
      %s21 = sadd.s32 1, %s17
    $region7: #{tpu_custom_call.1} parent=1 // loop_footer_branch
      %16 = sbr.rel target = $region3
    $region8: #{tpu_custom_call.1} parent=1 // loop_exit
      _
    %782 = vsyncpa [#allocation3], 1
    %s783 = scalar_lea.sflag [#allocation3], 1
    %784 = vsyncpa %s783, 1

</llo_original>
